<compile_context>
chip_gen: v6e
topology: v6e:2x2x1
jax: 0.10.0
libtpu: 0.0.40
codegen_flags: <defaults>
</compile_context>

<pallas_src>
import functools
import math

import jax
import jax.numpy as jnp
from jax import lax
from jax.experimental import pallas as pl
from jax.experimental.pallas import tpu as pltpu


def _gaussian_taps(kernel_size=5, sigma=1.0):
    """Python-float taps of torch's _get_gaussian_kernel1d (fixed, non-trainable)."""
    half = (kernel_size - 1) * 0.5
    xs = [-half + i for i in range(kernel_size)]
    pdf = [math.exp(-0.5 * (v / sigma) ** 2) for v in xs]
    s = sum(pdf)
    return tuple(p / s for p in pdf)


_HALO = 128  # lane-aligned halo on each side of the blur staging scratch


def _catlite_kernel(x_ref, abg_ref, w1_ref, b1_ref, w2_ref, b2_ref, o_ref, xp_ref,
                    *, t_true, taps):
    # x_ref/o_ref: (1, C, Tp) block of one batch element (time on lanes, lane-dense).
    # abg_ref:     (1, 3)            [alpha, beta, gamma]
    # w1/b1:       (S, C) / (S, 1)   mlp[0]  (1x1 conv == dense over channels)
    # w2/b2:       (C, S) / (C, 1)   mlp[2]
    # xp_ref:      (C, Tp + 2*_HALO) VMEM scratch: zero-padded blur staging.
    _, C, Tp = x_ref.shape
    x = x_ref[0, :, :].astype(jnp.float32)                              # (C, Tp)

    padded = Tp != t_true
    if padded:
        lane = lax.broadcasted_iota(jnp.int32, (C, Tp), 1)
        valid = lane < t_true

    # ---- GAP: mean over the true T (padded lanes hold zeros) -----------------
    gap = jnp.sum(x, axis=-1, keepdims=True) * (1.0 / t_true)           # (C, 1)

    # ---- GMP: max of the 5-tap Gaussian blur (shifted adds, no MXU) ----------
    # Stage x into a zero-padded scratch; the taps become plain static lane slices
    # and the zero halos reproduce Conv2d padding=(0, 2) exactly.
    xp_ref[:, 0:_HALO] = jnp.zeros((C, _HALO), jnp.float32)
    xp_ref[:, _HALO + Tp:_HALO + Tp + _HALO] = jnp.zeros((C, _HALO), jnp.float32)
    xp_ref[:, _HALO:_HALO + Tp] = x
    xb = taps[0] * xp_ref[:, _HALO - 2:_HALO - 2 + Tp]
    for j in range(1, 5):
        xb = xb + taps[j] * xp_ref[:, _HALO - 2 + j:_HALO - 2 + j + Tp]
    if padded:
        xb = jnp.where(valid, xb, -jnp.inf)
    gmp = jnp.max(xb, axis=-1, keepdims=True)                           # (C, 1)

    # ---- GEP: softmax entropy, folded as ent = log z - (1/z) * sum(ex*(x-m)) --
    m = jnp.max(jnp.where(valid, x, -jnp.inf) if padded else x,
                axis=-1, keepdims=True)                                 # (C, 1)
    xc = x - m
    ex = jnp.exp(xc)
    if padded:
        ex = jnp.where(valid, ex, 0.0)
    z = jnp.sum(ex, axis=-1, keepdims=True)
    sxm = jnp.sum(ex * xc, axis=-1, keepdims=True)
    ent = jnp.log(z) - pl.reciprocal(z, approx=True) * sxm              # (C, 1)

    # per-batch min/max normalization over channels (matches torch; divides by zero
    # if all channel entropies are equal — same flaw as the reference module).
    e_min = jnp.min(ent, axis=0, keepdims=True)
    e_max = jnp.max(ent, axis=0, keepdims=True)
    gep = (ent - e_min) / (e_max - e_min)                               # (C, 1)

    # ---- shared MLP on all three descriptors at once (tiny matmuls, left as-is) --
    col = lax.broadcasted_iota(jnp.int32, (C, 3), 1)
    feats = jnp.where(col == 0, gap, jnp.where(col == 1, gmp, gep))     # (C, 3)
    h = jnp.dot(w1_ref[...], feats, preferred_element_type=jnp.float32) + b1_ref[...]
    h = jnp.maximum(h, 0.0)                                             # (S, 3)
    y = jnp.dot(w2_ref[...], h, preferred_element_type=jnp.float32) + b2_ref[...]  # (C, 3)

    # ---- channel score and gate (one lane-dense full-tile store) -------------
    logits = jnp.sum(y * abg_ref[...], axis=1, keepdims=True)           # (C, 1)
    score = 1.0 / (1.0 + jnp.exp(-logits))
    o_ref[0, :, :] = (x_ref[0, :, :] * score).astype(o_ref.dtype)       # re-read x from VMEM


@jax.jit
def catlite_pallas(x, params):
    """x: (N, C, 1, T) — same NCHW convention as the PyTorch module (H == 1)."""
    N, C, H, T = x.shape
    assert H == 1, "CATLite's Gaussian filter (Conv2d(1,1,(1,5))) requires H == 1"
    S = params["w1"].shape[0]

    # lane-pad T to a multiple of 128 so all loads/stores stay unmasked; the kernel
    # masks the padded lanes out of the max / softmax reductions.
    Tp = ((T + 127) // 128) * 128
    x3 = x.reshape(N, C, T)
    if Tp != T:
        x3 = jnp.pad(x3, ((0, 0), (0, 0), (0, Tp - T)))

    w1 = params["w1"].reshape(S, C).astype(jnp.float32)
    b1 = params["b1"].reshape(S, 1).astype(jnp.float32)
    w2 = params["w2"].reshape(C, S).astype(jnp.float32)
    b2 = params["b2"].reshape(C, 1).astype(jnp.float32)
    abg = jnp.concatenate(
        [params["alpha"], params["beta"], params["gamma"]]).reshape(1, 3).astype(jnp.float32)

    kernel = functools.partial(_catlite_kernel, t_true=T, taps=_gaussian_taps(5, 1.0))

    grid_spec = pltpu.PrefetchScalarGridSpec(
        num_scalar_prefetch=0,
        grid=(N,),                                              # one batch element per step
        in_specs=[
            pl.BlockSpec((1, C, Tp), lambda n: (n, 0, 0)),      # x: streamed per batch
            pl.BlockSpec((1, 3), lambda n: (0, 0)),             # [alpha, beta, gamma]
            pl.BlockSpec((S, C), lambda n: (0, 0)),             # weights stay VMEM-resident
            pl.BlockSpec((S, 1), lambda n: (0, 0)),
            pl.BlockSpec((C, S), lambda n: (0, 0)),
            pl.BlockSpec((C, 1), lambda n: (0, 0)),
        ],
        out_specs=pl.BlockSpec((1, C, Tp), lambda n: (n, 0, 0)),
        scratch_shapes=[pltpu.VMEM((C, Tp + 2 * _HALO), jnp.float32)],
    )

    out3 = pl.pallas_call(
        kernel,
        out_shape=jax.ShapeDtypeStruct((N, C, Tp), x.dtype),
        grid_spec=grid_spec,
        compiler_params=pltpu.CompilerParams(
            dimension_semantics=("parallel",)),    # batch axis can split across TCs (v7x)
    )(x3, abg, w1, b1, w2, b2)
    # TODO(synk): for extremely long recordings where a single (C, T) block exceeds VMEM,
    # split into a two-phase reduce(m, z, Σex·(x−m), Σx, max-blur)-then-gate grid over T tiles;
    # bf16 x/out I/O is a further ~2x roofline win on mem-bound shapes (compute stays f32).

    if Tp != T:
        out3 = out3[:, :, :T]
    return out3.reshape(N, C, 1, T)


def catlite_reference(x, p):
    """Pure-JAX transcription of the PyTorch forward."""
    N, C, H, T = x.shape
    S = p["w1"].shape[0]
    k = jnp.asarray(_gaussian_taps(5, 1.0), jnp.float32)

    # gauss_filter: Conv2d(1, 1, (1, 5), padding=(0, 2), bias=False) along the last axis
    xp = jnp.pad(x, ((0, 0), (0, 0), (0, 0), (2, 2)))
    x_blur = sum(k[j] * xp[..., j:j + T] for j in range(5))

    w1 = p["w1"].reshape(S, C)
    w2 = p["w2"].reshape(C, S)

    def mlp(v):                                            # v: (N, C)
        h = jnp.maximum(v @ w1.T + p["b1"], 0.0)
        return h @ w2.T + p["b2"]

    c_gap = mlp(x.mean(axis=(-2, -1)))                     # (N, C)
    c_gmp = mlp(x_blur.max(axis=(-2, -1)))
    pi = jax.nn.softmax(x, axis=-1)
    ent = -(pi * jnp.log(pi)).sum(axis=(-2, -1))           # (N, C)
    e_min = ent.min(axis=-1, keepdims=True)
    e_max = ent.max(axis=-1, keepdims=True)
    c_gep = mlp((ent - e_min) / (e_max - e_min))
    score = jax.nn.sigmoid(p["alpha"] * c_gap + p["beta"] * c_gmp + p["gamma"] * c_gep)
    return score[:, :, None, None] * x


def init_params(key, in_channels, reduction_rate):
    C = in_channels
    S = C // reduction_rate
    ks = jax.random.split(key, 7)
    return {
        # mlp[0]: Conv2d(C, S, 1, bias=True)
        "w1": 0.1 * jax.random.normal(ks[0], (S, C, 1, 1), jnp.float32),
        "b1": 0.1 * jax.random.normal(ks[1], (S,), jnp.float32),
        # mlp[2]: Conv2d(S, C, 1, bias=True)
        "w2": 0.1 * jax.random.normal(ks[2], (C, S, 1, 1), jnp.float32),
        "b2": 0.1 * jax.random.normal(ks[3], (C,), jnp.float32),
        # c_alpha / c_beta / c_gamma are zero-initialised in the torch module (which would make
        # the forward collapse to 0.5*x); use nonzero values so the test exercises every branch.
        "alpha": jax.random.normal(ks[4], (1,), jnp.float32),
        "beta": jax.random.normal(ks[5], (1,), jnp.float32),
        "gamma": jax.random.normal(ks[6], (1,), jnp.float32),
    }


if __name__ == "__main__":
    key = jax.random.PRNGKey(0)
    k_x, k_p = jax.random.split(key)

    N, C, T = 2, 16, 128          # NCHW with H == 1 (EEG-style); T=128 keeps lanes dense
    reduction_rate = 4
    x = jax.random.normal(k_x, (N, C, 1, T), jnp.float32)
    params = init_params(k_p, C, reduction_rate)

    out = jax.block_until_ready(catlite_pallas(x, params))
    ref = jax.block_until_ready(catlite_reference(x, params))

    assert out.shape == x.shape
    max_diff = float(jnp.max(jnp.abs(out - ref)))
    assert jnp.allclose(out, ref, rtol=2e-2, atol=2e-2), f"max abs diff {max_diff}"
    print("KERNEL_OK")
</pallas_src>

<mosaic_0001>
module attributes {stable_mosaic.version = 11 : i64} {
  func.func @_catlite_kernel(%arg0: i32, %arg1: memref<1x16x128xf32, #tpu.memory_space<vmem>>, %arg2: memref<1x3xf32, #tpu.memory_space<vmem>>, %arg3: memref<4x16xf32, #tpu.memory_space<vmem>>, %arg4: memref<4x1xf32, #tpu.memory_space<vmem>>, %arg5: memref<16x4xf32, #tpu.memory_space<vmem>>, %arg6: memref<16x1xf32, #tpu.memory_space<vmem>>, %arg7: memref<1x16x128xf32, #tpu.memory_space<vmem>>, %arg8: memref<16x384xf32, #tpu.memory_space<vmem>>) attributes {dimension_semantics = [#tpu.dimension_semantics<parallel>], iteration_bounds = array<i64: 2>, scalar_prefetch = 0 : i64, scratch_operands = 1 : i64, tpu.core_type = #tpu.core_type<tc>, window_params = [{transform_indices = @transform_0, window_bounds = array<i64: 1, 16, 128>}, {pipeline_mode = #tpu.pipeline_mode<synchronous>, transform_indices = @transform_1, window_bounds = array<i64: 1, 3>}, {pipeline_mode = #tpu.pipeline_mode<synchronous>, transform_indices = @transform_2, window_bounds = array<i64: 4, 16>}, {pipeline_mode = #tpu.pipeline_mode<synchronous>, transform_indices = @transform_3, window_bounds = array<i64: 4, 1>}, {pipeline_mode = #tpu.pipeline_mode<synchronous>, transform_indices = @transform_4, window_bounds = array<i64: 16, 4>}, {pipeline_mode = #tpu.pipeline_mode<synchronous>, transform_indices = @transform_5, window_bounds = array<i64: 16, 1>}, {transform_indices = @transform_6, window_bounds = array<i64: 1, 16, 128>}]} {
    %c0 = arith.constant 0 : index
    %c0_0 = arith.constant 0 : index
    %c0_1 = arith.constant 0 : index
    %0 = vector.load %arg1[%c0, %c0_0, %c0_1] : memref<1x16x128xf32, #tpu.memory_space<vmem>>, vector<1x16x128xf32>
    %1 = vector.shape_cast %0 : vector<1x16x128xf32> to vector<16x128xf32>
    %cst = arith.constant dense<0.000000e+00> : vector<16xf32>
    %2 = vector.multi_reduction <add>, %1, %cst [1] : vector<16x128xf32> to vector<16xf32>
    %3 = vector.shape_cast %2 : vector<16xf32> to vector<16x1xf32>
    %cst_2 = arith.constant 7.812500e-03 : f32
    %4 = vector.broadcast %cst_2 : f32 to vector<16x1xf32>
    %5 = arith.mulf %3, %4 : vector<16x1xf32>
    %cst_3 = arith.constant 0.000000e+00 : f32
    %6 = vector.broadcast %cst_3 : f32 to vector<16x128xf32>
    %c0_4 = arith.constant 0 : index
    %c0_5 = arith.constant 0 : index
    %7 = vector.load %arg8[%c0_4, %c0_5] : memref<16x384xf32, #tpu.memory_space<vmem>>, vector<16x128xf32>
    tpu.vector_store %arg8[%c0_4, %c0_5], %6 {strides = array<i32>} : memref<16x384xf32, #tpu.memory_space<vmem>>, vector<16x128xf32>,
    %cst_6 = arith.constant 0.000000e+00 : f32
    %8 = vector.broadcast %cst_6 : f32 to vector<16x128xf32>
    %c0_7 = arith.constant 0 : index
    %c256 = arith.constant 256 : index
    %9 = vector.load %arg8[%c0_7, %c256] : memref<16x384xf32, #tpu.memory_space<vmem>>, vector<16x128xf32>
    tpu.vector_store %arg8[%c0_7, %c256], %8 {strides = array<i32>} : memref<16x384xf32, #tpu.memory_space<vmem>>, vector<16x128xf32>,
    %c0_8 = arith.constant 0 : index
    %c128 = arith.constant 128 : index
    %10 = vector.load %arg8[%c0_8, %c128] : memref<16x384xf32, #tpu.memory_space<vmem>>, vector<16x128xf32>
    tpu.vector_store %arg8[%c0_8, %c128], %1 {strides = array<i32>} : memref<16x384xf32, #tpu.memory_space<vmem>>, vector<16x128xf32>,
    %c0_9 = arith.constant 0 : index
    %c126 = arith.constant 126 : index
    %11 = vector.load %arg8[%c0_9, %c126] : memref<16x384xf32, #tpu.memory_space<vmem>>, vector<16x128xf32>
    %cst_10 = arith.constant 0.054488685 : f32
    %12 = vector.broadcast %cst_10 : f32 to vector<16x128xf32>
    %13 = arith.mulf %12, %11 : vector<16x128xf32>
    %c0_11 = arith.constant 0 : index
    %c127 = arith.constant 127 : index
    %14 = vector.load %arg8[%c0_11, %c127] : memref<16x384xf32, #tpu.memory_space<vmem>>, vector<16x128xf32>
    %cst_12 = arith.constant 0.244201347 : f32
    %15 = vector.broadcast %cst_12 : f32 to vector<16x128xf32>
    %16 = arith.mulf %15, %14 : vector<16x128xf32>
    %17 = arith.addf %13, %16 : vector<16x128xf32>
    %c0_13 = arith.constant 0 : index
    %c128_14 = arith.constant 128 : index
    %18 = vector.load %arg8[%c0_13, %c128_14] : memref<16x384xf32, #tpu.memory_space<vmem>>, vector<16x128xf32>
    %cst_15 = arith.constant 0.402619958 : f32
    %19 = vector.broadcast %cst_15 : f32 to vector<16x128xf32>
    %20 = arith.mulf %19, %18 : vector<16x128xf32>
    %21 = arith.addf %17, %20 : vector<16x128xf32>
    %c0_16 = arith.constant 0 : index
    %c129 = arith.constant 129 : index
    %22 = vector.load %arg8[%c0_16, %c129] : memref<16x384xf32, #tpu.memory_space<vmem>>, vector<16x128xf32>
    %cst_17 = arith.constant 0.244201347 : f32
    %23 = vector.broadcast %cst_17 : f32 to vector<16x128xf32>
    %24 = arith.mulf %23, %22 : vector<16x128xf32>
    %25 = arith.addf %21, %24 : vector<16x128xf32>
    %c0_18 = arith.constant 0 : index
    %c130 = arith.constant 130 : index
    %26 = vector.load %arg8[%c0_18, %c130] : memref<16x384xf32, #tpu.memory_space<vmem>>, vector<16x128xf32>
    %cst_19 = arith.constant 0.054488685 : f32
    %27 = vector.broadcast %cst_19 : f32 to vector<16x128xf32>
    %28 = arith.mulf %27, %26 : vector<16x128xf32>
    %29 = arith.addf %25, %28 : vector<16x128xf32>
    %cst_20 = arith.constant dense<0xFF800000> : vector<16xf32>
    %30 = vector.multi_reduction <maximumf>, %29, %cst_20 [1] : vector<16x128xf32> to vector<16xf32>
    %31 = vector.shape_cast %30 : vector<16xf32> to vector<16x1xf32>
    %cst_21 = arith.constant dense<0xFF800000> : vector<16xf32>
    %32 = vector.multi_reduction <maximumf>, %1, %cst_21 [1] : vector<16x128xf32> to vector<16xf32>
    %33 = vector.shape_cast %32 : vector<16xf32> to vector<16x1xf32>
    %34 = vector.broadcast %33 : vector<16x1xf32> to vector<16x128xf32>
    %35 = arith.subf %1, %34 : vector<16x128xf32>
    %36 = math.exp %35 : vector<16x128xf32>
    %cst_22 = arith.constant dense<0.000000e+00> : vector<16xf32>
    %37 = vector.multi_reduction <add>, %36, %cst_22 [1] : vector<16x128xf32> to vector<16xf32>
    %38 = vector.shape_cast %37 : vector<16xf32> to vector<16x1xf32>
    %39 = arith.mulf %36, %35 : vector<16x128xf32>
    %cst_23 = arith.constant dense<0.000000e+00> : vector<16xf32>
    %40 = vector.multi_reduction <add>, %39, %cst_23 [1] : vector<16x128xf32> to vector<16xf32>
    %41 = vector.shape_cast %40 : vector<16xf32> to vector<16x1xf32>
    %42 = math.log %38 : vector<16x1xf32>
    %43 = tpu.reciprocal %38 {approx = true} : vector<16x1xf32> -> vector<16x1xf32>
    %44 = arith.mulf %43, %41 : vector<16x1xf32>
    %45 = arith.subf %42, %44 : vector<16x1xf32>
    %cst_24 = arith.constant dense<0x7F800000> : vector<1xf32>
    %46 = vector.multi_reduction <minimumf>, %45, %cst_24 [0] : vector<16x1xf32> to vector<1xf32>
    %47 = vector.shape_cast %46 : vector<1xf32> to vector<1x1xf32>
    %cst_25 = arith.constant dense<0xFF800000> : vector<1xf32>
    %48 = vector.multi_reduction <maximumf>, %45, %cst_25 [0] : vector<16x1xf32> to vector<1xf32>
    %49 = vector.shape_cast %48 : vector<1xf32> to vector<1x1xf32>
    %50 = vector.broadcast %47 : vector<1x1xf32> to vector<16x1xf32>
    %51 = arith.subf %45, %50 : vector<16x1xf32>
    %52 = arith.subf %49, %47 : vector<1x1xf32>
    %53 = vector.broadcast %52 : vector<1x1xf32> to vector<16x1xf32>
    %54 = arith.divf %51, %53 : vector<16x1xf32>
    %55 = tpu.iota {dimensions = array<i32: 1>} : vector<16x3xi32>
    %c0_i32 = arith.constant 0 : i32
    %56 = vector.broadcast %c0_i32 : i32 to vector<16x3xi32>
    %57 = arith.cmpi eq, %55, %56 : vector<16x3xi32>
    %c1_i32 = arith.constant 1 : i32
    %58 = vector.broadcast %c1_i32 : i32 to vector<16x3xi32>
    %59 = arith.cmpi eq, %55, %58 : vector<16x3xi32>
    %60 = vector.shape_cast %31 : vector<16x1xf32> to vector<16x1xf32>
    %61 = vector.broadcast %60 : vector<16x1xf32> to vector<16x3xf32>
    %62 = vector.shape_cast %54 : vector<16x1xf32> to vector<16x1xf32>
    %63 = vector.broadcast %62 : vector<16x1xf32> to vector<16x3xf32>
    %64 = arith.select %59, %61, %63 : vector<16x3xi1>, vector<16x3xf32>
    %65 = vector.shape_cast %5 : vector<16x1xf32> to vector<16x1xf32>
    %66 = vector.broadcast %65 : vector<16x1xf32> to vector<16x3xf32>
    %67 = arith.select %57, %66, %64 : vector<16x3xi1>, vector<16x3xf32>
    %c0_26 = arith.constant 0 : index
    %c0_27 = arith.constant 0 : index
    %68 = vector.load %arg3[%c0_26, %c0_27] : memref<4x16xf32, #tpu.memory_space<vmem>>, vector<4x16xf32>
    %cst_28 = arith.constant dense<0.000000e+00> : vector<4x3xf32>
    %69 = tpu.matmul %68, %67, %cst_28 {dimension_numbers = #tpu.dot_dimension_numbers<[1], [0], [0], [1], [0, 0, 1, 1], [], []>} : vector<4x16xf32>, vector<16x3xf32>, vector<4x3xf32> -> vector<4x3xf32>
    %c0_29 = arith.constant 0 : index
    %c0_30 = arith.constant 0 : index
    %70 = vector.load %arg4[%c0_29, %c0_30] : memref<4x1xf32, #tpu.memory_space<vmem>>, vector<4x1xf32>
    %71 = vector.broadcast %70 : vector<4x1xf32> to vector<4x3xf32>
    %72 = arith.addf %69, %71 : vector<4x3xf32>
    %cst_31 = arith.constant 0.000000e+00 : f32
    %73 = vector.broadcast %cst_31 : f32 to vector<4x3xf32>
    %74 = arith.maximumf %72, %73 : vector<4x3xf32>
    %c0_32 = arith.constant 0 : index
    %c0_33 = arith.constant 0 : index
    %75 = vector.load %arg5[%c0_32, %c0_33] : memref<16x4xf32, #tpu.memory_space<vmem>>, vector<16x4xf32>
    %cst_34 = arith.constant dense<0.000000e+00> : vector<16x3xf32>
    %76 = tpu.matmul %75, %74, %cst_34 {dimension_numbers = #tpu.dot_dimension_numbers<[1], [0], [0], [1], [0, 0, 1, 1], [], []>} : vector<16x4xf32>, vector<4x3xf32>, vector<16x3xf32> -> vector<16x3xf32>
    %c0_35 = arith.constant 0 : index
    %c0_36 = arith.constant 0 : index
    %77 = vector.load %arg6[%c0_35, %c0_36] : memref<16x1xf32, #tpu.memory_space<vmem>>, vector<16x1xf32>
    %78 = vector.broadcast %77 : vector<16x1xf32> to vector<16x3xf32>
    %79 = arith.addf %76, %78 : vector<16x3xf32>
    %c0_37 = arith.constant 0 : index
    %c0_38 = arith.constant 0 : index
    %80 = vector.load %arg2[%c0_37, %c0_38] : memref<1x3xf32, #tpu.memory_space<vmem>>, vector<1x3xf32>
    %81 = vector.broadcast %80 : vector<1x3xf32> to vector<16x3xf32>
    %82 = arith.mulf %79, %81 : vector<16x3xf32>
    %cst_39 = arith.constant dense<0.000000e+00> : vector<16xf32>
    %83 = vector.multi_reduction <add>, %82, %cst_39 [1] : vector<16x3xf32> to vector<16xf32>
    %84 = vector.shape_cast %83 : vector<16xf32> to vector<16x1xf32>
    %cst_40 = arith.constant 0.000000e+00 : f32
    %85 = vector.broadcast %cst_40 : f32 to vector<16x1xf32>
    %86 = arith.subf %85, %84 : vector<16x1xf32>
    %87 = math.exp %86 : vector<16x1xf32>
    %cst_41 = arith.constant 1.000000e+00 : f32
    %88 = vector.broadcast %cst_41 : f32 to vector<16x1xf32>
    %89 = arith.addf %88, %87 : vector<16x1xf32>
    %cst_42 = arith.constant 1.000000e+00 : f32
    %90 = vector.broadcast %cst_42 : f32 to vector<16x1xf32>
    %91 = arith.divf %90, %89 : vector<16x1xf32>
    %c0_43 = arith.constant 0 : index
    %c0_44 = arith.constant 0 : index
    %c0_45 = arith.constant 0 : index
    %92 = vector.load %arg1[%c0_43, %c0_44, %c0_45] : memref<1x16x128xf32, #tpu.memory_space<vmem>>, vector<1x16x128xf32>
    %93 = vector.shape_cast %92 : vector<1x16x128xf32> to vector<16x128xf32>
    %94 = vector.broadcast %91 : vector<16x1xf32> to vector<16x128xf32>
    %95 = arith.mulf %93, %94 : vector<16x128xf32>
    %c0_46 = arith.constant 0 : index
    %c0_47 = arith.constant 0 : index
    %c0_48 = arith.constant 0 : index
    %96 = vector.load %arg7[%c0_46, %c0_47, %c0_48] : memref<1x16x128xf32, #tpu.memory_space<vmem>>, vector<1x16x128xf32>
    %97 = vector.shape_cast %96 : vector<1x16x128xf32> to vector<16x128xf32>
    %98 = vector.shape_cast %95 : vector<16x128xf32> to vector<1x16x128xf32>
    tpu.vector_store %arg7[%c0_46, %c0_47, %c0_48], %98 {strides = array<i32>} : memref<1x16x128xf32, #tpu.memory_space<vmem>>, vector<1x16x128xf32>,
    return
  }
  func.func @transform_0(%arg0: i32) -> (i32, i32, i32) {
    %c0_i32 = arith.constant 0 : i32
    %c0_i32_0 = arith.constant 0 : i32
    %c0_i32_1 = arith.constant 0 : i32
    return %arg0, %c0_i32, %c0_i32_0 : i32, i32, i32
  }
  func.func @transform_1(%arg0: i32) -> (i32, i32) {
    %c0_i32 = arith.constant 0 : i32
    %c0_i32_0 = arith.constant 0 : i32
    %c0_i32_1 = arith.constant 0 : i32
    return %c0_i32, %c0_i32_0 : i32, i32
  }
  func.func @transform_2(%arg0: i32) -> (i32, i32) {
    %c0_i32 = arith.constant 0 : i32
    %c0_i32_0 = arith.constant 0 : i32
    %c0_i32_1 = arith.constant 0 : i32
    return %c0_i32, %c0_i32_0 : i32, i32
  }
  func.func @transform_3(%arg0: i32) -> (i32, i32) {
    %c0_i32 = arith.constant 0 : i32
    %c0_i32_0 = arith.constant 0 : i32
    %c0_i32_1 = arith.constant 0 : i32
    return %c0_i32, %c0_i32_0 : i32, i32
  }
  func.func @transform_4(%arg0: i32) -> (i32, i32) {
    %c0_i32 = arith.constant 0 : i32
    %c0_i32_0 = arith.constant 0 : i32
    %c0_i32_1 = arith.constant 0 : i32
    return %c0_i32, %c0_i32_0 : i32, i32
  }
  func.func @transform_5(%arg0: i32) -> (i32, i32) {
    %c0_i32 = arith.constant 0 : i32
    %c0_i32_0 = arith.constant 0 : i32
    %c0_i32_1 = arith.constant 0 : i32
    return %c0_i32, %c0_i32_0 : i32, i32
  }
  func.func @transform_6(%arg0: i32) -> (i32, i32, i32) {
    %c0_i32 = arith.constant 0 : i32
    %c0_i32_0 = arith.constant 0 : i32
    %c0_i32_1 = arith.constant 0 : i32
    return %arg0, %c0_i32, %c0_i32_0 : i32, i32, i32
  }
}

</mosaic_0001>

<llo_original>
// kernel: catlite_pallas.1
$region0: #{catlite_pallas.1}
  #allocation0 [shape = 'u32[]', space=smem, size = 0x4, offset = 0x4, fixed_abs, tag = 'smem constant byte address 0x4 - core index']
  #allocation1 [shape = 'u32[144,128]{1,0:T(1,128)}', space=vmem, size = 0x12000, scoped, tag = 'internal scratch']
  #allocation2 [shape = 'f32[16,384]{1,0:T(8,128)}', space=vmem, size = 0x6000, scoped, tag = 'scratch operand']
  %s0 = inlined_call_operand.vmem [shape: f32[2,16,128], index: 0, kind: input, shape index: {}]
  %s1 = inlined_call_operand.vmem [shape: f32[1,3], index: 1, kind: input, shape index: {}]
  %s2 = inlined_call_operand.vmem [shape: f32[4,16], index: 2, kind: input, shape index: {}]
  %s3 = inlined_call_operand.vmem [shape: f32[4,1], index: 3, kind: input, shape index: {}]
  %s4 = inlined_call_operand.vmem [shape: f32[16,4], index: 4, kind: input, shape index: {}]
  %s5 = inlined_call_operand.vmem [shape: f32[16,1], index: 5, kind: input, shape index: {}]
  %s6 = inlined_call_operand.hbm [shape: f32[2,16,128], index: 6, kind: output, shape index: {}]
  %s7 = sld [smem:[#allocation0]]
  $region57: #{catlite_pallas.1} parent=0
    _
  %s9 = ssub.s32 1, %s7
  %s10 = scalar_select 0, %s9, %s7
  $region1: #{catlite_pallas.1} parent=0
    #allocation3 [shape = 'u8[16384]{0}', space=vmem, size = 0x4000, scoped, tag = 'output window, operand 0']
    #allocation4 [shape = 's32[2]{0}', space=sflag, size = 0x8, scoped, tag = 'scoped memory for catlite_pallas.1']
    %11 = vsyncpa [#allocation4], 0
    %s12 = scalar_lea.sflag [#allocation4], 1
    %13 = vsyncpa %s12, 0
    loop: start=0, step=1, limit=4
    $region2: #{catlite_pallas.1} parent=1 // loop_pre_header
      _
    $region3: #{catlite_pallas.1} parent=1 // loop_header
      %s15 = sphi 0, %s19
      %p16 = scmp.ge.s32.totalorder %s15, 4
      %s25 = sphi 0, %s27
      %s28 = sphi 0, %s25
      %s29 = sphi 0, %s28
      %s45 = sphi 0, %s29
      %s49 = sphi 0, %s49
      %s51 = sphi 0, %s49
      %s52 = sphi 0, %s51
      %s66 = sphi 0, %s52
      %s70 = sphi 0, %s70
      %s72 = sphi 0, %s70
      %s73 = sphi 0, %s72
      %s87 = sphi 0, %s73
      %s91 = sphi 0, %s91
      %s93 = sphi 0, %s91
      %s94 = sphi 0, %s93
      %s108 = sphi 0, %s94
      %s112 = sphi 0, %s112
      %s114 = sphi 0, %s112
      %s115 = sphi 0, %s114
      %s129 = sphi 0, %s115
      %s133 = sphi 0, %s133
      %s135 = sphi 0, %s133
      %s136 = sphi 0, %s135
      %s150 = sphi 0, %s136
      %s156 = sphi 0, %s158
      %s159 = sphi 0, %s156
      %s160 = sphi 0, %s159
      %s176 = sphi 0, %s160
    $region4: #{catlite_pallas.1} parent=1 // loop_header_branch
      %18 = sbr.rel (%p16) target = $region8
    $region5: #{catlite_pallas.1} parent=1 // loop_body
      %s20 = ssub.s32 %s15, 1
      %s21 = ssub.s32 %s15, 2
      %s22 = sadd.s32 %s15, 1
      %s23 = ssub.s32 %s15, %s22
      %p24 = scmp.eq.s32.totalorder %s23, 0
      %s26 = sadd.s32 %s25, 1
      %s27 = scalar_select %p24, %s25, %s26
      %p30 = pneg %p24
      %p31 = scmp.eq.s32.totalorder %s15, 1
      %p32 = por %p30, %p31
      %p33 = scmp.ne.s32.totalorder %s25, %s28
      %p34 = scmp.eq.s32.totalorder %s15, 0
      %p35 = por %p33, %p34
      %p36 = scmp.ne.s32.totalorder %s25, %s28
      %p37 = scmp.eq.s32.totalorder %s20, 1
      %p38 = por %p36, %p37
      %p39 = scmp.ne.s32.totalorder %s28, %s29
      %p40 = scmp.eq.s32.totalorder %s20, 0
      %p41 = por %p39, %p40
      %p42 = scmp.ne.s32.totalorder %s28, %s29
      %p43 = scmp.eq.s32.totalorder %s21, 1
      %p44 = por %p42, %p43
      %p46 = scmp.ne.s32.totalorder %s29, %s45
      %p47 = scmp.eq.s32.totalorder %s21, 0
      %p48 = por %p46, %p47
      %s50 = sadd.s32 %s49, 1
      %p53 = scmp.eq.s32.totalorder %s15, 1
      %p54 = scmp.ne.s32.totalorder %s49, %s51
      %p55 = scmp.eq.s32.totalorder %s15, 0
      %p56 = por %p54, %p55
      %p57 = scmp.ne.s32.totalorder %s49, %s51
      %p58 = scmp.eq.s32.totalorder %s20, 1
      %p59 = por %p57, %p58
      %p60 = scmp.ne.s32.totalorder %s51, %s52
      %p61 = scmp.eq.s32.totalorder %s20, 0
      %p62 = por %p60, %p61
      %p63 = scmp.ne.s32.totalorder %s51, %s52
      %p64 = scmp.eq.s32.totalorder %s21, 1
      %p65 = por %p63, %p64
      %p67 = scmp.ne.s32.totalorder %s52, %s66
      %p68 = scmp.eq.s32.totalorder %s21, 0
      %p69 = por %p67, %p68
      %s71 = sadd.s32 %s70, 1
      %p74 = scmp.eq.s32.totalorder %s15, 1
      %p75 = scmp.ne.s32.totalorder %s70, %s72
      %p76 = scmp.eq.s32.totalorder %s15, 0
      %p77 = por %p75, %p76
      %p78 = scmp.ne.s32.totalorder %s70, %s72
      %p79 = scmp.eq.s32.totalorder %s20, 1
      %p80 = por %p78, %p79
      %p81 = scmp.ne.s32.totalorder %s72, %s73
      %p82 = scmp.eq.s32.totalorder %s20, 0
      %p83 = por %p81, %p82
      %p84 = scmp.ne.s32.totalorder %s72, %s73
      %p85 = scmp.eq.s32.totalorder %s21, 1
      %p86 = por %p84, %p85
      %p88 = scmp.ne.s32.totalorder %s73, %s87
      %p89 = scmp.eq.s32.totalorder %s21, 0
      %p90 = por %p88, %p89
      %s92 = sadd.s32 %s91, 1
      %p95 = scmp.eq.s32.totalorder %s15, 1
      %p96 = scmp.ne.s32.totalorder %s91, %s93
      %p97 = scmp.eq.s32.totalorder %s15, 0
      %p98 = por %p96, %p97
      %p99 = scmp.ne.s32.totalorder %s91, %s93
      %p100 = scmp.eq.s32.totalorder %s20, 1
      %p101 = por %p99, %p100
      %p102 = scmp.ne.s32.totalorder %s93, %s94
      %p103 = scmp.eq.s32.totalorder %s20, 0
      %p104 = por %p102, %p103
      %p105 = scmp.ne.s32.totalorder %s93, %s94
      %p106 = scmp.eq.s32.totalorder %s21, 1
      %p107 = por %p105, %p106
      %p109 = scmp.ne.s32.totalorder %s94, %s108
      %p110 = scmp.eq.s32.totalorder %s21, 0
      %p111 = por %p109, %p110
      %s113 = sadd.s32 %s112, 1
      %p116 = scmp.eq.s32.totalorder %s15, 1
      %p117 = scmp.ne.s32.totalorder %s112, %s114
      %p118 = scmp.eq.s32.totalorder %s15, 0
      %p119 = por %p117, %p118
      %p120 = scmp.ne.s32.totalorder %s112, %s114
      %p121 = scmp.eq.s32.totalorder %s20, 1
      %p122 = por %p120, %p121
      %p123 = scmp.ne.s32.totalorder %s114, %s115
      %p124 = scmp.eq.s32.totalorder %s20, 0
      %p125 = por %p123, %p124
      %p126 = scmp.ne.s32.totalorder %s114, %s115
      %p127 = scmp.eq.s32.totalorder %s21, 1
      %p128 = por %p126, %p127
      %p130 = scmp.ne.s32.totalorder %s115, %s129
      %p131 = scmp.eq.s32.totalorder %s21, 0
      %p132 = por %p130, %p131
      %s134 = sadd.s32 %s133, 1
      %p137 = scmp.eq.s32.totalorder %s15, 1
      %p138 = scmp.ne.s32.totalorder %s133, %s135
      %p139 = scmp.eq.s32.totalorder %s15, 0
      %p140 = por %p138, %p139
      %p141 = scmp.ne.s32.totalorder %s133, %s135
      %p142 = scmp.eq.s32.totalorder %s20, 1
      %p143 = por %p141, %p142
      %p144 = scmp.ne.s32.totalorder %s135, %s136
      %p145 = scmp.eq.s32.totalorder %s20, 0
      %p146 = por %p144, %p145
      %p147 = scmp.ne.s32.totalorder %s135, %s136
      %p148 = scmp.eq.s32.totalorder %s21, 1
      %p149 = por %p147, %p148
      %p151 = scmp.ne.s32.totalorder %s136, %s150
      %p152 = scmp.eq.s32.totalorder %s21, 0
      %p153 = por %p151, %p152
      %s154 = ssub.s32 %s15, %s22
      %p155 = scmp.eq.s32.totalorder %s154, 0
      %s157 = sadd.s32 %s156, 1
      %s158 = scalar_select %p155, %s156, %s157
      %p161 = pneg %p155
      %p162 = scmp.eq.s32.totalorder %s15, 1
      %p163 = por %p161, %p162
      %p164 = scmp.ne.s32.totalorder %s156, %s159
      %p165 = scmp.eq.s32.totalorder %s15, 0
      %p166 = por %p164, %p165
      %p167 = scmp.ne.s32.totalorder %s156, %s159
      %p168 = scmp.eq.s32.totalorder %s20, 1
      %p169 = por %p167, %p168
      %p170 = scmp.ne.s32.totalorder %s159, %s160
      %p171 = scmp.eq.s32.totalorder %s20, 0
      %p172 = por %p170, %p171
      %p173 = scmp.ne.s32.totalorder %s159, %s160
      %p174 = scmp.eq.s32.totalorder %s21, 1
      %p175 = por %p173, %p174
      %p177 = scmp.ne.s32.totalorder %s160, %s176
      %p178 = scmp.eq.s32.totalorder %s21, 0
      %p179 = por %p177, %p178
      %p180 = scmp.le.s32.totalorder 1, %s15
      %p181 = scmp.lt.s32.totalorder %s15, 3
      %p182 = pnand %p180, %p181
      %p183 = pneg %p182
      // Predicated region
      $region9: #{catlite_pallas.1} parent=5 // pred_check
        _
      $region10: #{catlite_pallas.1} parent=5 // pred_check_branch
        %185 = sbr.rel (%p182) target = $region12
      $region11: #{catlite_pallas.1} parent=5 // pred_region
        %s186 = ssub.s32 %s15, 1
        // Predicated region
        $region13: #{catlite_pallas.1} parent=11 // pred_check
          %p187 = pneg %p62
        $region14: #{catlite_pallas.1} parent=11 // pred_check_branch
          %189 = sbr.rel (%p187) target = $region16
        $region15: #{catlite_pallas.1} parent=11 // pred_region
          _
        $region16: #{catlite_pallas.1} parent=11 // pred_fallthru
          _
        // Predicated region
        $region17: #{catlite_pallas.1} parent=11 // pred_check
          %p190 = pneg %p83
        $region18: #{catlite_pallas.1} parent=11 // pred_check_branch
          %192 = sbr.rel (%p190) target = $region20
        $region19: #{catlite_pallas.1} parent=11 // pred_region
          _
        $region20: #{catlite_pallas.1} parent=11 // pred_fallthru
          _
        // Predicated region
        $region21: #{catlite_pallas.1} parent=11 // pred_check
          %p193 = pneg %p104
        $region22: #{catlite_pallas.1} parent=11 // pred_check_branch
          %195 = sbr.rel (%p193) target = $region24
        $region23: #{catlite_pallas.1} parent=11 // pred_region
          _
        $region24: #{catlite_pallas.1} parent=11 // pred_fallthru
          _
        // Predicated region
        $region25: #{catlite_pallas.1} parent=11 // pred_check
          %p196 = pneg %p125
        $region26: #{catlite_pallas.1} parent=11 // pred_check_branch
          %198 = sbr.rel (%p196) target = $region28
        $region27: #{catlite_pallas.1} parent=11 // pred_region
          _
        $region28: #{catlite_pallas.1} parent=11 // pred_fallthru
          _
        // Predicated region
        $region29: #{catlite_pallas.1} parent=11 // pred_check
          %p199 = pneg %p146
        $region30: #{catlite_pallas.1} parent=11 // pred_check_branch
          %201 = sbr.rel (%p199) target = $region32
        $region31: #{catlite_pallas.1} parent=11 // pred_region
          _
        $region32: #{catlite_pallas.1} parent=11 // pred_fallthru
          _
      $region12: #{catlite_pallas.1} parent=5 // pred_fallthru
        _
      %p202 = scmp.lt.s32.totalorder %s15, 2
      // Predicated region
      $region33: #{catlite_pallas.1} parent=5 // pred_check
        %p203 = pneg %p202
      $region34: #{catlite_pallas.1} parent=5 // pred_check_branch
        %205 = sbr.rel (%p203) target = $region36
      $region35: #{catlite_pallas.1} parent=5 // pred_region
        // Predicated region
        $region37: #{catlite_pallas.1} parent=35 // pred_check
          %p206 = pneg %p35
        $region38: #{catlite_pallas.1} parent=35 // pred_check_branch
          %208 = sbr.rel (%p206) target = $region40
        $region39: #{catlite_pallas.1} parent=35 // pred_region
          %p209 = scmp.lt.s32.totalorder %s15, 1
          %s210 = scalar_select %p209, %s15, 1
          %s211 = smul.addr %s210, 2
          %s212 = smul.addr %s211, 8
          %s213 = scalar_lea.vmem %s0, %s212
        $region40: #{catlite_pallas.1} parent=35 // pred_fallthru
          _
      $region36: #{catlite_pallas.1} parent=5 // pred_fallthru
        _
      %p214 = scmp.le.s32.totalorder 1, %s15
      %p215 = scmp.lt.s32.totalorder %s15, 3
      %p216 = pnand %p214, %p215
      %p217 = pneg %p216
      // Predicated region
      $region41: #{catlite_pallas.1} parent=5 // pred_check
        _
      $region42: #{catlite_pallas.1} parent=5 // pred_check_branch
        %219 = sbr.rel (%p216) target = $region44
      $region43: #{catlite_pallas.1} parent=5 // pred_region
        %s220 = ssub.s32 %s15, 1
        %p221 = scmp.lt.s32.totalorder %s20, 1
        %s222 = scalar_select %p221, %s20, 1
        %s223 = smul.addr %s222, 2
        %s224 = smul.addr %s223, 8
        %s225 = scalar_lea.vmem %s0, %s224
        %p226 = pneg %p41
        %p227 = pneg %p38
        %p228 = pneg %p62
        %p229 = pneg %p59
        %p230 = pneg %p83
        %p231 = pneg %p80
        %p232 = pneg %p104
        %p233 = pneg %p101
        %p234 = pneg %p125
        %p235 = pneg %p122
        %p236 = pneg %p146
        %p237 = pneg %p143
        %p238 = pneg %p172
        %p239 = pneg %p169
        %s240 = sand.u32 %s159, 1
        %s241 = scalar_lea.sflag [#allocation4], %s240
        %s242 = sand.u32 %s159, 1
        %s243 = smul.addr %s242, 16
        %s244 = scalar_lea.vmem [#allocation3], %s243
        %p245 = scmp.lt.s32.totalorder %s20, 1
        %s246 = scalar_select %p245, %s20, 1
        %s247 = smul.addr %s246, 2
        %s248 = smul.addr %s247, 8
        %s249 = scalar_lea.vmem %s0, %s248
        %v250 = vld [vmem:[%s249] sm:$0xff]
        %v251 = vld [vmem:[%s249 + $0x8] sm:$0xff]
        %252 = vadd.xlane.f32.xlu0 %v250
        %v253 = vpop.xlane.xlu0 %252
        %254 = vadd.xlane.f32.xlu0 %v251
        %v255 = vpop.xlane.xlu0 %254
        %v256 = vmul.f32 %v253, 0.0078125
        %v257 = vmul.f32 %v255, 0.0078125
        %258 = vst [vmem:[#allocation2] sm:$0xff] 0.0
        %259 = vst [vmem:[#allocation2 + $0x18] sm:$0xff] 0.0
        %260 = vst [vmem:[#allocation2 + $0x10] sm:$0xff] 0.0
        %261 = vst [vmem:[#allocation2 + $0x28] sm:$0xff] 0.0
        %262 = vst [vmem:[#allocation2 + $0x8] sm:$0xff] %v250
        %263 = vst [vmem:[#allocation2 + $0x20] sm:$0xff] %v251
        %v264 = vld [vmem:[#allocation2] sm:$0xff]
        %v265 = vld [vmem:[#allocation2 + $0x8] sm:$0xff]
        %v266 = vld [vmem:[#allocation2 + $0x18] sm:$0xff]
        %v267 = vld [vmem:[#allocation2 + $0x20] sm:$0xff]
        %v268 = vmul.f32 %v264, 0.054488685
        %v269 = vmul.f32 %v265, 0.054488685
        %v270 = vmul.f32 %v266, 0.054488685
        %v271 = vmul.f32 %v267, 0.054488685
        %v272 = vmul.f32 %v264, 0.24420135
        %v273 = vmul.f32 %v265, 0.24420135
        %v274 = vmul.f32 %v266, 0.24420135
        %v275 = vmul.f32 %v267, 0.24420135
        %280 = vrot.lane.b32.xlu0 %v272, 127
        %v281 = vpop.permute.xlu0 %280
        %282 = vrot.lane.b32.xlu0 %v273, 127
        %v283 = vpop.permute.xlu0 %282
        %284 = vrot.lane.b32.xlu0 %v274, 127
        %v285 = vpop.permute.xlu0 %284
        %286 = vrot.lane.b32.xlu0 %v275, 127
        %v287 = vpop.permute.xlu0 %286
        %vm288 = vcmask 1039360
        %v289 = vsel %vm288, %v281, %v283
        %v290 = vsel %vm288, %v285, %v287
        %v295 = vadd.f32 %v268, %v289
        %v296 = vadd.f32 %v269, %v283
        %v297 = vadd.f32 %v270, %v290
        %v298 = vadd.f32 %v271, %v287
        %v299 = vmul.f32 %v265, 0.40261996
        %v300 = vmul.f32 %v267, 0.40261996
        %303 = vrot.lane.b32.xlu0 %v299, 126
        %v304 = vpop.permute.xlu0 %303
        %305 = vrot.lane.b32.xlu0 %v300, 126
        %v306 = vpop.permute.xlu0 %305
        %v309 = vadd.f32 %v295, %v304
        %v310 = vadd.f32 %v296, %v304
        %v311 = vadd.f32 %v297, %v306
        %v312 = vadd.f32 %v298, %v306
        %v313 = vld [vmem:[#allocation2 + $0x8] sm:$0xff]
        %v314 = vld [vmem:[#allocation2 + $0x10] sm:$0xff]
        %v315 = vld [vmem:[#allocation2 + $0x20] sm:$0xff]
        %v316 = vld [vmem:[#allocation2 + $0x28] sm:$0xff]
        %v317 = vmul.f32 %v313, 0.24420135
        %v318 = vmul.f32 %v314, 0.24420135
        %v319 = vmul.f32 %v315, 0.24420135
        %v320 = vmul.f32 %v316, 0.24420135
        %325 = vrot.lane.b32.xlu0 %v317, 125
        %v326 = vpop.permute.xlu0 %325
        %327 = vrot.lane.b32.xlu0 %v318, 125
        %v328 = vpop.permute.xlu0 %327
        %329 = vrot.lane.b32.xlu0 %v319, 125
        %v330 = vpop.permute.xlu0 %329
        %331 = vrot.lane.b32.xlu0 %v320, 125
        %v332 = vpop.permute.xlu0 %331
        %vm333 = vcmask 1022976
        %v334 = vsel %vm333, %v326, %v328
        %v335 = vsel %vm333, %v330, %v332
        %v340 = vadd.f32 %v309, %v326
        %v341 = vadd.f32 %v310, %v334
        %v342 = vadd.f32 %v311, %v330
        %v343 = vadd.f32 %v312, %v335
        %v344 = vmul.f32 %v313, 0.054488685
        %v345 = vmul.f32 %v314, 0.054488685
        %v346 = vmul.f32 %v315, 0.054488685
        %v347 = vmul.f32 %v316, 0.054488685
        %352 = vrot.lane.b32.xlu0 %v344, 124
        %v353 = vpop.permute.xlu0 %352
        %354 = vrot.lane.b32.xlu0 %v345, 124
        %v355 = vpop.permute.xlu0 %354
        %356 = vrot.lane.b32.xlu0 %v346, 124
        %v357 = vpop.permute.xlu0 %356
        %358 = vrot.lane.b32.xlu0 %v347, 124
        %v359 = vpop.permute.xlu0 %358
        %vm360 = vcmask 1014784
        %v361 = vsel %vm360, %v353, %v355
        %v362 = vsel %vm360, %v357, %v359
        %v367 = vadd.f32 %v340, %v353
        %v368 = vadd.f32 %v341, %v361
        %v369 = vadd.f32 %v342, %v357
        %v370 = vadd.f32 %v343, %v362
        %vm371 = vcmask 1048560
        %v372 = vsel %vm371, %v367, -inf
        %vm373 = vcmask 1031168
        %v374 = vsel %vm373, %v368, -inf
        %v375 = vmax.f32 %v372, %v374
        %376 = vmax.xlane.f32.xlu0 %v375
        %v377 = vpop.xlane.xlu0 %376
        %v378 = vsel %vm371, %v369, -inf
        %v379 = vsel %vm373, %v370, -inf
        %v380 = vmax.f32 %v378, %v379
        %381 = vmax.xlane.f32.xlu0 %v380
        %v382 = vpop.xlane.xlu0 %381
        %383 = vmax.xlane.f32.xlu0 %v250
        %v384 = vpop.xlane.xlu0 %383
        %385 = vmax.xlane.f32.xlu0 %v251
        %v386 = vpop.xlane.xlu0 %385
        %v387 = vsub.f32 %v250, %v384
        %v388 = vsub.f32 %v251, %v386
        %v389 = vmul.f32 %v387, 1.442695
        %v390 = vpow.pop %v389
        %v391 = vmul.f32 %v388, 1.442695
        %v392 = vpow.pop %v391
        %393 = vadd.xlane.f32.xlu0 %v390
        %v394 = vpop.xlane.xlu0 %393
        %395 = vadd.xlane.f32.xlu0 %v392
        %v396 = vpop.xlane.xlu0 %395
        %v397 = vmul.f32 %v390, %v387
        %v398 = vmul.f32 %v392, %v388
        %399 = vadd.xlane.f32.xlu0 %v397
        %v400 = vpop.xlane.xlu0 %399
        %401 = vadd.xlane.f32.xlu0 %v398
        %v402 = vpop.xlane.xlu0 %401
        %v403 = vlog2.pop %v394
        %v404 = vmul.f32 %v403, 0.6931472
        %v405 = vlog2.pop %v396
        %v406 = vmul.f32 %v405, 0.6931472
        %v407 = vrcp.pop %v394
        %v408 = vrcp.pop %v396
        %v409 = vmul.f32 %v407, %v400
        %v410 = vmul.f32 %v408, %v402
        %v411 = vsub.f32 %v404, %v409
        %v412 = vsub.f32 %v406, %v410
        %v413 = vmin.f32 %v411, %v412
        %v414 = vrot.slane %v413, 4
        %v415 = vmin.f32 %v413, %v414
        %v416 = vrot.slane %v415, 2
        %v417 = vmin.f32 %v415, %v416
        %v418 = vrot.slane %v417, 1
        %v419 = vmin.f32 %v417, %v418
        %v420 = vmax.f32 %v411, %v412
        %v421 = vrot.slane %v420, 4
        %v422 = vmax.f32 %v420, %v421
        %v423 = vrot.slane %v422, 2
        %v424 = vmax.f32 %v422, %v423
        %v425 = vrot.slane %v424, 1
        %v426 = vmax.f32 %v424, %v425
        %v427 = vsub.f32 %v411, %v419
        %v428 = vsub.f32 %v412, %v419
        %v429 = vsub.f32 %v426, %v419
        %v430 = vrcp.pop %v429
        %v431 = vmul.f32 %v427, %v430
        %v432 = vmul.f32 %v428, %v430
        %v433 = vlaneseq
        %v434 = vand.u32 %v433, 127
        %vm435 = vcmp.eq.s32.totalorder %v434, 0
        %vm436 = vcmp.eq.s32.totalorder %v434, 1
        %v437 = vsel %vm436, %v377, %v431
        %v438 = vsel %vm436, %v382, %v432
        %v439 = vsel %vm435, %v256, %v437
        %v440 = vsel %vm435, %v257, %v438
        %v441 = vld [vmem:[%s2] sm:$0xf]
        %v442 = vld [vmem:[%s3] sm:$0xf]
        %444 = vset.pattern.permute.xlu0 0
        %445 = vperm.xlu0 %444, %v442
        %v446 = vpop.permute.xlu0 %445
        %vm448 = vcmask 130048
        %v450 = vsel %vm448, %v441, 0
        %452 = vmatprep.subr.mxu0 0.0
        %453 = vmatpush1.msra.mxu0 0.0
        %454 = vmatprep.subr.mxu0 0.0
        %455 = vmatpush1.msra.mxu0 0.0
        %456 = vmatprep.subr.mxu0 0.0
        %457 = vmatpush1.msra.mxu0 0.0
        %458 = vmatprep.subr.mxu0 0.0
        %459 = vmatpush1.msra.mxu0 0.0
        %460 = vmatprep.subr.mxu0 0.0
        %461 = vmatpush1.msra.mxu0 0.0
        %462 = vmatprep.subr.mxu0 0.0
        %463 = vmatpush1.msra.mxu0 0.0
        %464 = vmatprep.subr.mxu0 0.0
        %465 = vmatpush1.msra.mxu0 0.0
        %466 = vmatprep.subr.mxu0 0.0
        %467 = vmatpush1.msra.mxu0 0.0
        %468 = vmatprep.subr.mxu0 0.0
        %469 = vmatpush1.msra.mxu0 0.0
        %470 = vmatprep.subr.mxu0 0.0
        %471 = vmatpush1.msra.mxu0 0.0
        %472 = vmatprep.subr.mxu0 0.0
        %473 = vmatpush1.msra.mxu0 0.0
        %474 = vmatprep.subr.mxu0 0.0
        %475 = vmatpush1.msra.mxu0 0.0
        %476 = vmatprep.subr.mxu0 0.0
        %477 = vmatpush1.msra.mxu0 0.0
        %478 = vmatprep.subr.mxu0 0.0
        %479 = vmatpush1.msra.mxu0 0.0
        %480 = vmatprep.subr.mxu0 0.0
        %481 = vmatpush1.msra.mxu0 %v440
        %482 = vmatprep.subr.mxu0 0.0
        %483 = vmatpush1.msra.mxu0 %v439
        %484 = vmatprep.subr.mxu0 0.0
        %485 = vmatpush2.msra.mxu0 0.0
        %486 = vmatprep.subr.mxu0 0.0
        %487 = vmatpush2.msra.mxu0 0.0
        %488 = vmatprep.subr.mxu0 0.0
        %489 = vmatpush2.msra.mxu0 0.0
        %490 = vmatprep.subr.mxu0 0.0
        %491 = vmatpush2.msra.mxu0 0.0
        %492 = vmatprep.subr.mxu0 0.0
        %493 = vmatpush2.msra.mxu0 0.0
        %494 = vmatprep.subr.mxu0 0.0
        %495 = vmatpush2.msra.mxu0 0.0
        %496 = vmatprep.subr.mxu0 0.0
        %497 = vmatpush2.msra.mxu0 0.0
        %498 = vmatprep.subr.mxu0 0.0
        %499 = vmatpush2.msra.mxu0 0.0
        %500 = vmatprep.subr.mxu0 0.0
        %501 = vmatpush2.msra.mxu0 0.0
        %502 = vmatprep.subr.mxu0 0.0
        %503 = vmatpush2.msra.mxu0 0.0
        %504 = vmatprep.subr.mxu0 0.0
        %505 = vmatpush2.msra.mxu0 0.0
        %506 = vmatprep.subr.mxu0 0.0
        %507 = vmatpush2.msra.mxu0 0.0
        %508 = vmatprep.subr.mxu0 0.0
        %509 = vmatpush2.msra.mxu0 0.0
        %510 = vmatprep.subr.mxu0 0.0
        %511 = vmatpush2.msra.mxu0 0.0
        %512 = vmatprep.subr.mxu0 0.0
        %513 = vmatpush2.msra.mxu0 0.0
        %514 = vmatprep.subr.mxu0 0.0
        %515 = vmatpush2.msra.mxu0 0.0
        %516 = vmatprep.mubr.f32.mxu0 0.0
        %517 = vmatmul.mubr.f32.gmra.mxu0 %v450
        %v518 = vpop.f32.mrf.mxu0
        %v519 = vadd.f32 %v446, %v518
        %v520 = vpop.f32.mrf.mxu0
        %521 = vdwg.mxu0
        %v522 = vmax.f32 %v519, 0.0
        %v523 = vld [vmem:[%s4] sm:$0xff]
        %v524 = vld [vmem:[%s4 + $0x8] sm:$0xff]
        %v525 = vld [vmem:[%s5] sm:$0xff]
        %v526 = vld [vmem:[%s5 + $0x8] sm:$0xff]
        %528 = vset.pattern.permute.xlu0 0
        %529 = vperm.xlu0 %528, %v525
        %v530 = vpop.permute.xlu0 %529
        %533 = vset.pattern.permute.xlu0 0
        %534 = vperm.xlu0 %533, %v526
        %v535 = vpop.permute.xlu0 %534
        %vm537 = vcmask 31744
        %v539 = vsel %vm537, %v523, 0
        %v542 = vsel %vm537, %v524, 0
        %vm544 = vcmask 1043456
        %v546 = vsel %vm544, %v522, 0
        %548 = vmatprep.subr.mxu0 0.0
        %549 = vmatpush1.msra.mxu0 0.0
        %550 = vmatprep.subr.mxu0 0.0
        %551 = vmatpush1.msra.mxu0 0.0
        %552 = vmatprep.subr.mxu0 0.0
        %553 = vmatpush1.msra.mxu0 0.0
        %554 = vmatprep.subr.mxu0 0.0
        %555 = vmatpush1.msra.mxu0 0.0
        %556 = vmatprep.subr.mxu0 0.0
        %557 = vmatpush1.msra.mxu0 0.0
        %558 = vmatprep.subr.mxu0 0.0
        %559 = vmatpush1.msra.mxu0 0.0
        %560 = vmatprep.subr.mxu0 0.0
        %561 = vmatpush1.msra.mxu0 0.0
        %562 = vmatprep.subr.mxu0 0.0
        %563 = vmatpush1.msra.mxu0 0.0
        %564 = vmatprep.subr.mxu0 0.0
        %565 = vmatpush1.msra.mxu0 0.0
        %566 = vmatprep.subr.mxu0 0.0
        %567 = vmatpush1.msra.mxu0 0.0
        %568 = vmatprep.subr.mxu0 0.0
        %569 = vmatpush1.msra.mxu0 0.0
        %570 = vmatprep.subr.mxu0 0.0
        %571 = vmatpush1.msra.mxu0 0.0
        %572 = vmatprep.subr.mxu0 0.0
        %573 = vmatpush1.msra.mxu0 0.0
        %574 = vmatprep.subr.mxu0 0.0
        %575 = vmatpush1.msra.mxu0 0.0
        %576 = vmatprep.subr.mxu0 0.0
        %577 = vmatpush1.msra.mxu0 0.0
        %578 = vmatprep.subr.mxu0 0.0
        %579 = vmatpush1.msra.mxu0 %v546
        %580 = vmatprep.subr.mxu0 0.0
        %581 = vmatpush2.msra.mxu0 0.0
        %582 = vmatprep.subr.mxu0 0.0
        %583 = vmatpush2.msra.mxu0 0.0
        %584 = vmatprep.subr.mxu0 0.0
        %585 = vmatpush2.msra.mxu0 0.0
        %586 = vmatprep.subr.mxu0 0.0
        %587 = vmatpush2.msra.mxu0 0.0
        %588 = vmatprep.subr.mxu0 0.0
        %589 = vmatpush2.msra.mxu0 0.0
        %590 = vmatprep.subr.mxu0 0.0
        %591 = vmatpush2.msra.mxu0 0.0
        %592 = vmatprep.subr.mxu0 0.0
        %593 = vmatpush2.msra.mxu0 0.0
        %594 = vmatprep.subr.mxu0 0.0
        %595 = vmatpush2.msra.mxu0 0.0
        %596 = vmatprep.subr.mxu0 0.0
        %597 = vmatpush2.msra.mxu0 0.0
        %598 = vmatprep.subr.mxu0 0.0
        %599 = vmatpush2.msra.mxu0 0.0
        %600 = vmatprep.subr.mxu0 0.0
        %601 = vmatpush2.msra.mxu0 0.0
        %602 = vmatprep.subr.mxu0 0.0
        %603 = vmatpush2.msra.mxu0 0.0
        %604 = vmatprep.subr.mxu0 0.0
        %605 = vmatpush2.msra.mxu0 0.0
        %606 = vmatprep.subr.mxu0 0.0
        %607 = vmatpush2.msra.mxu0 0.0
        %608 = vmatprep.subr.mxu0 0.0
        %609 = vmatpush2.msra.mxu0 0.0
        %610 = vmatprep.subr.mxu0 0.0
        %611 = vmatpush2.msra.mxu0 0.0
        %612 = vmatprep.mubr.f32.mxu0 0.0
        %613 = vmatmul.mubr.f32.gmra.mxu0 %v539
        %v614 = vpop.f32.mrf.mxu0
        %v615 = vadd.f32 %v530, %v614
        %v616 = vpop.f32.mrf.mxu0
        %617 = vmatprep.mubr.f32.mxu0 0.0
        %618 = vmatmul.mubr.f32.gmra.mxu0 %v542
        %v619 = vpop.f32.mrf.mxu0
        %v620 = vadd.f32 %v535, %v619
        %v621 = vpop.f32.mrf.mxu0
        %622 = vdwg.mxu0
        %v623 = vld [vmem:[%s1] sm:$0x1]
        %v625 = vlaneseq
        %v626 = vshrl.u32 %v625, 7
        %v627 = vsub.s32 0, %v626
        %v628 = vrot.slane %v623, %v627
        %v630 = vmul.f32 %v615, %v628
        %v631 = vmul.f32 %v620, %v628
        %vm632 = vcmask 23552
        %v633 = vsel %vm632, %v630, 0.0
        %634 = vadd.xlane.f32.xlu0 %v633
        %v635 = vpop.xlane.xlu0 %634
        %v636 = vsel %vm632, %v631, 0.0
        %637 = vadd.xlane.f32.xlu0 %v636
        %v638 = vpop.xlane.xlu0 %637
        %v639 = vsub.f32 0.0, %v635
        %v640 = vsub.f32 0.0, %v638
        %v641 = vmul.f32 %v639, 1.442695
        %v642 = vpow.pop %v641
        %v643 = vmul.f32 %v640, 1.442695
        %v644 = vpow.pop %v643
        %v645 = vadd.f32 %v642, 1.0
        %v646 = vadd.f32 %v644, 1.0
        %v647 = vrcp.pop %v645
        %v648 = vmul.f32 1.0, %v647
        %v649 = vrcp.pop %v646
        %v650 = vmul.f32 1.0, %v649
        %v651 = vld [vmem:[%s249] sm:$0xff]
        %v652 = vld [vmem:[%s249 + $0x8] sm:$0xff]
        %v653 = vmul.f32 %v651, %v648
        %v654 = vmul.f32 %v652, %v650
        %655 = vst [vmem:[%s244] sm:$0xff] %v653
        %656 = vst [vmem:[%s244 + $0x8] sm:$0xff] %v654
        %s657 = sand.u32 %s159, 1
        %s658 = scalar_lea.sflag [#allocation4], %s657
        %s659 = sand.u32 %s159, 1
        %s660 = smul.addr %s659, 16
        %s661 = scalar_lea.vmem [#allocation3], %s660
        // Predicated region
        $region45: #{catlite_pallas.1} parent=43 // pred_check
          %p662 = pneg %p169
        $region46: #{catlite_pallas.1} parent=43 // pred_check_branch
          %664 = sbr.rel (%p662) target = $region48
        $region47: #{catlite_pallas.1} parent=43 // pred_region
          %s666 = ssub.s32 256, 256
          %667 = vsyncadd %s658, %s666
          %s668 = smul.addr %s20, 2
          %s669 = smul.addr %s668, 128
          %s670 = scalar_lea.hbm %s6, %s669
          %s671 = sshll.u32 %s661, 4
          %s672 = int_to_ptr.vmem [resolvable:$true] %s671
          %677 = dma.vmem_to_hbm [thread:$0]  %s672, 256, %s670, %s658, 128, 128, 8
        $region48: #{catlite_pallas.1} parent=43 // pred_fallthru
          _
      $region44: #{catlite_pallas.1} parent=5 // pred_fallthru
        _
      %p678 = scmp.le.s32.totalorder 2, %s15
      // Predicated region
      $region49: #{catlite_pallas.1} parent=5 // pred_check
        %p679 = pneg %p678
      $region50: #{catlite_pallas.1} parent=5 // pred_check_branch
        %681 = sbr.rel (%p679) target = $region52
      $region51: #{catlite_pallas.1} parent=5 // pred_region
        %s682 = ssub.s32 %s15, 2
        // Predicated region
        $region53: #{catlite_pallas.1} parent=51 // pred_check
          %p683 = pneg %p175
        $region54: #{catlite_pallas.1} parent=51 // pred_check_branch
          %685 = sbr.rel (%p683) target = $region56
        $region55: #{catlite_pallas.1} parent=51 // pred_region
          %s686 = sand.u32 %s160, 1
          %s687 = scalar_lea.sflag [#allocation4], %s686
          %s688 = sand.u32 %s160, 1
          %s689 = smul.addr %s688, 16
          %s690 = scalar_lea.vmem [#allocation3], %s689
          %691 = dma.done %s687, 256
        $region56: #{catlite_pallas.1} parent=51 // pred_fallthru
          _
      $region52: #{catlite_pallas.1} parent=5 // pred_fallthru
        _
    $region6: #{catlite_pallas.1} parent=1 // loop_footer
      %s19 = sadd.s32 1, %s15
    $region7: #{catlite_pallas.1} parent=1 // loop_footer_branch
      %14 = sbr.rel target = $region3
    $region8: #{catlite_pallas.1} parent=1 // loop_exit
      _
    %692 = vsyncpa [#allocation4], 1
    %s693 = scalar_lea.sflag [#allocation4], 1
    %694 = vsyncpa %s693, 1

</llo_original>
